<compile_context>
chip_gen: v5e
topology: v5e:2x2
jax: 0.10.0
libtpu: 0.0.40
codegen_flags: <defaults>
</compile_context>

<pallas_src>
import itertools

import jax
import jax.numpy as jnp
import numpy as np
from jax.experimental import pallas as pl
from jax.experimental.pallas import tpu as pltpu

INC, OUTC = 4, 8                 # inc, outc of BasicConvolutionBlock
KS, STRIDE, DILATION = 3, 1, 1   # module defaults
KVOL = KS ** 3
N_POINTS = 512                   # number of active voxels (points), 2 batches
BN_EPS = 1e-5
LANE = 128
SUBLANE = 8


def _round_up(x, m):
    return (x + m - 1) // m * m


def _fused_conv_bn_relu_kernel(nvalid_ref, g_ref, w_ref, gb_ref, o_ref,
                               sum_ref, sumsq_ref):
    """Two-phase fused sparse-conv (collapsed-K matmul) + BatchNorm + ReLU.

    grid = (phase, point_tile).  Phase 0: accumulate per-channel sum / sum-of-squares
    of the conv output into VMEM scratch.  Phase 1: recompute the tile's conv output
    and apply normalize + affine + ReLU before the single lane-dense store.
    """
    phase = pl.program_id(0)
    tile = pl.program_id(1)

    @pl.when(jnp.logical_and(phase == 0, tile == 0))
    def _():
        sum_ref[...] = jnp.zeros_like(sum_ref)
        sumsq_ref[...] = jnp.zeros_like(sumsq_ref)

    # Conv: one collapsed-K contraction on the MXU (bf16 operands, f32 accumulation).
    y = jnp.dot(g_ref[...], w_ref[...], preferred_element_type=jnp.float32)

    @pl.when(phase == 0)
    def _():
        # Padded rows / padded channels of g and w are zero, so y is exactly zero
        # there: the statistics need no mask (single pass, biased variance later).
        sum_ref[...] += jnp.sum(y, axis=0, keepdims=True)
        sumsq_ref[...] += jnp.sum(y * y, axis=0, keepdims=True)

    @pl.when(phase == 1)
    def _():
        n_f = jnp.maximum(nvalid_ref[0], 1).astype(jnp.float32)   # guard n == 0
        mean = sum_ref[...] / n_f
        var = sumsq_ref[...] / n_f - mean * mean                  # biased (training)
        inv_std = jax.lax.rsqrt(var + BN_EPS)
        scale = gb_ref[0:1, :] * inv_std                          # gamma * inv_std
        shift = gb_ref[1:2, :] - mean * scale                     # beta - mean*scale
        o_ref[...] = jnp.maximum(y * scale + shift, 0.0).astype(o_ref.dtype)


def _gather_neighbors(feats, coords, kvol):
    """Kernel map + neighbor gather for a stride-1 sparse conv (plain-JAX glue)."""
    offs = jnp.array(
        list(itertools.product(range(-(KS // 2), KS // 2 + 1), repeat=3)),
        dtype=jnp.int32) * DILATION                                   # [K, 3]
    offs4 = jnp.concatenate([jnp.zeros((kvol, 1), jnp.int32), offs], axis=1)
    target = coords[None, :, :] + offs4[:, None, :]                    # [K, N, 4]
    eq = (target[:, :, None, :] == coords[None, None, :, :]).all(-1)   # [K, N, N]
    has = eq.any(-1)                                                   # [K, N]
    idx = jnp.argmax(eq, axis=-1)                                      # [K, N]
    gathered = jnp.where(has[..., None], feats[idx], 0.0)              # [K, N, Cin]
    return gathered.astype(jnp.float32)


def basic_convolution_block(feats, coords, weight, gamma, beta, *, tile_m=128):
    n, cin = feats.shape
    kvol, _, cout = weight.shape

    # ---- glue: kernel map + neighbor gather, then collapse K ----
    gathered = _gather_neighbors(feats, coords, kvol)                  # [K, N, Cin]
    kd = kvol * cin
    g_flat = jnp.transpose(gathered, (1, 0, 2)).reshape(n, kd)         # [N, K*Cin]
    w_flat = weight.astype(jnp.float32).reshape(kd, cout)              # [K*Cin, Cout]

    # ---- padding: lane-dense contraction and OUTPUT dims, tileable point dim ----
    kd_pad = _round_up(kd, LANE)
    cout_pad = _round_up(cout, LANE)        # lane-dense output: full 128-lane stores
    tile_m = _round_up(tile_m, SUBLANE)
    n_pad = _round_up(max(n, tile_m), tile_m)
    n_tiles = n_pad // tile_m

    # bf16 MXU operands (halves gather-tile VMEM + HBM DMA bytes); epilogue stays f32.
    g_flat = jnp.pad(g_flat, ((0, n_pad - n), (0, kd_pad - kd))).astype(jnp.bfloat16)
    w_flat = jnp.pad(w_flat, ((0, kd_pad - kd), (0, cout_pad - cout))).astype(jnp.bfloat16)

    # gamma/beta merged into one (2, Cout_pad) block (padded columns stay zero, so the
    # padded output channels come out exactly 0 and are sliced off below).
    gb = jnp.zeros((2, cout_pad), jnp.float32)
    gb = gb.at[0, :cout].set(gamma.astype(jnp.float32))
    gb = gb.at[1, :cout].set(beta.astype(jnp.float32))

    n_valid = jnp.array([n], dtype=jnp.int32)

    out = pl.pallas_call(
        _fused_conv_bn_relu_kernel,
        out_shape=jax.ShapeDtypeStruct((n_pad, cout_pad), jnp.float32),
        grid_spec=pltpu.PrefetchScalarGridSpec(
            num_scalar_prefetch=1,
            grid=(2, n_tiles),                                  # (phase, point tile)
            in_specs=[
                pl.BlockSpec((tile_m, kd_pad), lambda p, t, nref: (t, 0)),
                pl.BlockSpec((kd_pad, cout_pad), lambda p, t, nref: (0, 0)),
                pl.BlockSpec((2, cout_pad), lambda p, t, nref: (0, 0)),
            ],
            out_specs=pl.BlockSpec((tile_m, cout_pad), lambda p, t, nref: (t, 0)),
            scratch_shapes=[
                pltpu.VMEM((1, cout_pad), jnp.float32),   # sum(y)  per channel
                pltpu.VMEM((1, cout_pad), jnp.float32),   # sum(y*y) per channel
            ],
        ),
        compiler_params=pltpu.CompilerParams(
            # Both axes sequential: phase orders stats-before-normalize; the tile axis
            # accumulates into shared VMEM scratch.
            dimension_semantics=("arbitrary", "arbitrary"),
            vmem_limit_bytes=32 * 1024 * 1024,
        ),
    )(n_valid, g_flat, w_flat, gb)

    return out[:n, :cout]


def _reference(feats, coords, weight, gamma, beta, matmul_dtype=jnp.float32):
    """Pure-JAX reference.  matmul_dtype=bfloat16 mirrors the kernel's MXU operand
    rounding (f32 accumulation either way); float32 is the exact module semantics."""
    gathered = _gather_neighbors(feats, coords, weight.shape[0])
    y = jnp.einsum("knc,kcd->nd",
                   gathered.astype(matmul_dtype), weight.astype(matmul_dtype),
                   preferred_element_type=jnp.float32)
    mean = y.mean(axis=0, keepdims=True)
    var = ((y - mean) ** 2).mean(axis=0, keepdims=True)
    yn = gamma[None, :] * (y - mean) / jnp.sqrt(var + BN_EPS) + beta[None, :]
    return jnp.maximum(yn, 0.0)


if __name__ == "__main__":
    key = jax.random.PRNGKey(0)
    k_feat, k_w, k_c0, k_c1 = jax.random.split(key, 4)

    # Two batches, each with N_POINTS//2 unique voxels inside a 16^3 grid.
    grid_side = 16
    half = N_POINTS // 2
    coords_list = []
    for b, kc in enumerate((k_c0, k_c1)):
        lin = jax.random.permutation(kc, grid_side ** 3)[:half]
        xyz = jnp.stack([lin // (grid_side * grid_side),
                         (lin // grid_side) % grid_side,
                         lin % grid_side], axis=1).astype(jnp.int32)
        bcol = jnp.full((half, 1), b, dtype=jnp.int32)
        coords_list.append(jnp.concatenate([bcol, xyz], axis=1))
    coords = jnp.concatenate(coords_list, axis=0)                 # [N, 4]

    feats = jax.random.normal(k_feat, (N_POINTS, INC), dtype=jnp.float32)
    weight = 0.1 * jax.random.normal(k_w, (KVOL, INC, OUTC), dtype=jnp.float32)
    gamma = jnp.ones((OUTC,), dtype=jnp.float32)                  # BN init
    beta = jnp.zeros((OUTC,), dtype=jnp.float32)

    out = basic_convolution_block(feats, coords, weight, gamma, beta)
    out = jax.block_until_ready(out)

    # Tight check against a reference that uses the same bf16 MXU-operand rounding.
    ref_bf16 = _reference(feats, coords, weight, gamma, beta,
                          matmul_dtype=jnp.bfloat16)
    np.testing.assert_allclose(np.asarray(out), np.asarray(ref_bf16),
                               rtol=2e-3, atol=2e-3)

    # Loose check against exact f32 module semantics (tolerance reflects the
    # intentional bf16 matmul operands).
    ref_f32 = _reference(feats, coords, weight, gamma, beta,
                         matmul_dtype=jnp.float32)
    np.testing.assert_allclose(np.asarray(out), np.asarray(ref_f32),
                               rtol=5e-2, atol=5e-2)

    print("KERNEL_OK")
</pallas_src>

<mosaic_0001>
module attributes {stable_mosaic.version = 11 : i64} {
  func.func @_fused_conv_bn_relu_kernel(%arg0: i32, %arg1: i32, %arg2: memref<1xi32, #tpu.memory_space<smem>>, %arg3: memref<128x128xbf16, #tpu.memory_space<vmem>>, %arg4: memref<128x128xbf16, #tpu.memory_space<vmem>>, %arg5: memref<2x128xf32, #tpu.memory_space<vmem>>, %arg6: memref<128x128xf32, #tpu.memory_space<vmem>>, %arg7: memref<1x128xf32, #tpu.memory_space<vmem>>, %arg8: memref<1x128xf32, #tpu.memory_space<vmem>>) attributes {dimension_semantics = [#tpu.dimension_semantics<arbitrary>, #tpu.dimension_semantics<arbitrary>], iteration_bounds = array<i64: 2, 4>, scalar_prefetch = 1 : i64, scratch_operands = 2 : i64, tpu.core_type = #tpu.core_type<tc>, window_params = [{transform_indices = @transform_0, window_bounds = array<i64: 128, 128>}, {pipeline_mode = #tpu.pipeline_mode<synchronous>, transform_indices = @transform_1, window_bounds = array<i64: 128, 128>}, {pipeline_mode = #tpu.pipeline_mode<synchronous>, transform_indices = @transform_2, window_bounds = array<i64: 2, 128>}, {transform_indices = @transform_3, window_bounds = array<i64: 128, 128>}]} {
    %c0_i32 = arith.constant 0 : i32
    %0 = arith.cmpi eq, %arg0, %c0_i32 : i32
    %c0_i32_0 = arith.constant 0 : i32
    %1 = arith.cmpi eq, %arg1, %c0_i32_0 : i32
    %2 = arith.andi %0, %1 : i1
    %3 = arith.extui %2 : i1 to i32
    %c0_i32_1 = arith.constant 0 : i32
    %4 = arith.cmpi ne, %3, %c0_i32_1 : i32
    scf.if %4 {
      %cst_8 = arith.constant 0.000000e+00 : f32
      %14 = vector.broadcast %cst_8 : f32 to vector<1x128xf32>
      %c0_9 = arith.constant 0 : index
      %c0_10 = arith.constant 0 : index
      %15 = vector.load %arg7[%c0_9, %c0_10] : memref<1x128xf32, #tpu.memory_space<vmem>>, vector<1x128xf32>
      tpu.vector_store %arg7[%c0_9, %c0_10], %14 {strides = array<i32>} : memref<1x128xf32, #tpu.memory_space<vmem>>, vector<1x128xf32>,
      %cst_11 = arith.constant 0.000000e+00 : f32
      %16 = vector.broadcast %cst_11 : f32 to vector<1x128xf32>
      %c0_12 = arith.constant 0 : index
      %c0_13 = arith.constant 0 : index
      %17 = vector.load %arg8[%c0_12, %c0_13] : memref<1x128xf32, #tpu.memory_space<vmem>>, vector<1x128xf32>
      tpu.vector_store %arg8[%c0_12, %c0_13], %16 {strides = array<i32>} : memref<1x128xf32, #tpu.memory_space<vmem>>, vector<1x128xf32>,
    } else {
    }
    %c0 = arith.constant 0 : index
    %c0_2 = arith.constant 0 : index
    %5 = vector.load %arg3[%c0, %c0_2] : memref<128x128xbf16, #tpu.memory_space<vmem>>, vector<128x128xbf16>
    %c0_3 = arith.constant 0 : index
    %c0_4 = arith.constant 0 : index
    %6 = vector.load %arg4[%c0_3, %c0_4] : memref<128x128xbf16, #tpu.memory_space<vmem>>, vector<128x128xbf16>
    %cst = arith.constant dense<0.000000e+00> : vector<128x128xf32>
    %7 = tpu.matmul %5, %6, %cst {dimension_numbers = #tpu.dot_dimension_numbers<[1], [0], [0], [1], [0, 0, 1, 1], [], []>} : vector<128x128xbf16>, vector<128x128xbf16>, vector<128x128xf32> -> vector<128x128xf32>
    %c0_i32_5 = arith.constant 0 : i32
    %8 = arith.cmpi eq, %arg0, %c0_i32_5 : i32
    %9 = arith.extui %8 : i1 to i32
    %c0_i32_6 = arith.constant 0 : i32
    %10 = arith.cmpi ne, %9, %c0_i32_6 : i32
    scf.if %10 {
      %c0_8 = arith.constant 0 : index
      %c0_9 = arith.constant 0 : index
      %14 = vector.load %arg7[%c0_8, %c0_9] : memref<1x128xf32, #tpu.memory_space<vmem>>, vector<1x128xf32>
      %cst_10 = arith.constant dense<0.000000e+00> : vector<128xf32>
      %15 = vector.multi_reduction <add>, %7, %cst_10 [0] : vector<128x128xf32> to vector<128xf32>
      %16 = vector.shape_cast %15 : vector<128xf32> to vector<1x128xf32>
      %17 = arith.addf %14, %16 : vector<1x128xf32>
      %c0_11 = arith.constant 0 : index
      %c0_12 = arith.constant 0 : index
      %18 = vector.load %arg7[%c0_11, %c0_12] : memref<1x128xf32, #tpu.memory_space<vmem>>, vector<1x128xf32>
      tpu.vector_store %arg7[%c0_11, %c0_12], %17 {strides = array<i32>} : memref<1x128xf32, #tpu.memory_space<vmem>>, vector<1x128xf32>,
      %c0_13 = arith.constant 0 : index
      %c0_14 = arith.constant 0 : index
      %19 = vector.load %arg8[%c0_13, %c0_14] : memref<1x128xf32, #tpu.memory_space<vmem>>, vector<1x128xf32>
      %20 = arith.mulf %7, %7 : vector<128x128xf32>
      %cst_15 = arith.constant dense<0.000000e+00> : vector<128xf32>
      %21 = vector.multi_reduction <add>, %20, %cst_15 [0] : vector<128x128xf32> to vector<128xf32>
      %22 = vector.shape_cast %21 : vector<128xf32> to vector<1x128xf32>
      %23 = arith.addf %19, %22 : vector<1x128xf32>
      %c0_16 = arith.constant 0 : index
      %c0_17 = arith.constant 0 : index
      %24 = vector.load %arg8[%c0_16, %c0_17] : memref<1x128xf32, #tpu.memory_space<vmem>>, vector<1x128xf32>
      tpu.vector_store %arg8[%c0_16, %c0_17], %23 {strides = array<i32>} : memref<1x128xf32, #tpu.memory_space<vmem>>, vector<1x128xf32>,
    } else {
    }
    %c1_i32 = arith.constant 1 : i32
    %11 = arith.cmpi eq, %arg0, %c1_i32 : i32
    %12 = arith.extui %11 : i1 to i32
    %c0_i32_7 = arith.constant 0 : i32
    %13 = arith.cmpi ne, %12, %c0_i32_7 : i32
    scf.if %13 {
      %c0_8 = arith.constant 0 : index
      %14 = memref.load %arg2[%c0_8] : memref<1xi32, #tpu.memory_space<smem>>
      %c1_i32_9 = arith.constant 1 : i32
      %15 = arith.maxsi %14, %c1_i32_9 : i32
      %16 = arith.sitofp %15 : i32 to f32
      %c0_10 = arith.constant 0 : index
      %c0_11 = arith.constant 0 : index
      %17 = vector.load %arg7[%c0_10, %c0_11] : memref<1x128xf32, #tpu.memory_space<vmem>>, vector<1x128xf32>
      %18 = vector.broadcast %16 : f32 to vector<1x128xf32>
      %19 = arith.divf %17, %18 : vector<1x128xf32>
      %c0_12 = arith.constant 0 : index
      %c0_13 = arith.constant 0 : index
      %20 = vector.load %arg8[%c0_12, %c0_13] : memref<1x128xf32, #tpu.memory_space<vmem>>, vector<1x128xf32>
      %21 = vector.broadcast %16 : f32 to vector<1x128xf32>
      %22 = arith.divf %20, %21 : vector<1x128xf32>
      %23 = arith.mulf %19, %19 : vector<1x128xf32>
      %24 = arith.subf %22, %23 : vector<1x128xf32>
      %cst_14 = arith.constant 9.99999974E-6 : f32
      %25 = vector.broadcast %cst_14 : f32 to vector<1x128xf32>
      %26 = arith.addf %24, %25 : vector<1x128xf32>
      %27 = math.rsqrt %26 : vector<1x128xf32>
      %c0_15 = arith.constant 0 : index
      %c0_16 = arith.constant 0 : index
      %28 = vector.load %arg5[%c0_15, %c0_16] : memref<2x128xf32, #tpu.memory_space<vmem>>, vector<1x128xf32>
      %29 = arith.mulf %28, %27 : vector<1x128xf32>
      %c1 = arith.constant 1 : index
      %c0_17 = arith.constant 0 : index
      %30 = vector.load %arg5[%c1, %c0_17] : memref<2x128xf32, #tpu.memory_space<vmem>>, vector<1x128xf32>
      %31 = arith.mulf %19, %29 : vector<1x128xf32>
      %32 = arith.subf %30, %31 : vector<1x128xf32>
      %33 = vector.broadcast %29 : vector<1x128xf32> to vector<128x128xf32>
      %34 = arith.mulf %7, %33 : vector<128x128xf32>
      %35 = vector.broadcast %32 : vector<1x128xf32> to vector<128x128xf32>
      %36 = arith.addf %34, %35 : vector<128x128xf32>
      %cst_18 = arith.constant 0.000000e+00 : f32
      %37 = vector.broadcast %cst_18 : f32 to vector<128x128xf32>
      %38 = arith.maximumf %36, %37 : vector<128x128xf32>
      %c0_19 = arith.constant 0 : index
      %c0_20 = arith.constant 0 : index
      %39 = vector.load %arg6[%c0_19, %c0_20] : memref<128x128xf32, #tpu.memory_space<vmem>>, vector<128x128xf32>
      tpu.vector_store %arg6[%c0_19, %c0_20], %38 {strides = array<i32>} : memref<128x128xf32, #tpu.memory_space<vmem>>, vector<128x128xf32>,
    } else {
    }
    return
  }
  func.func @transform_0(%arg0: i32, %arg1: i32, %arg2: memref<1xi32, #tpu.memory_space<smem>>) -> (i32, i32) {
    %c0_i32 = arith.constant 0 : i32
    %c0_i32_0 = arith.constant 0 : i32
    return %arg1, %c0_i32 : i32, i32
  }
  func.func @transform_1(%arg0: i32, %arg1: i32, %arg2: memref<1xi32, #tpu.memory_space<smem>>) -> (i32, i32) {
    %c0_i32 = arith.constant 0 : i32
    %c0_i32_0 = arith.constant 0 : i32
    %c0_i32_1 = arith.constant 0 : i32
    return %c0_i32, %c0_i32_0 : i32, i32
  }
  func.func @transform_2(%arg0: i32, %arg1: i32, %arg2: memref<1xi32, #tpu.memory_space<smem>>) -> (i32, i32) {
    %c0_i32 = arith.constant 0 : i32
    %c0_i32_0 = arith.constant 0 : i32
    %c0_i32_1 = arith.constant 0 : i32
    return %c0_i32, %c0_i32_0 : i32, i32
  }
  func.func @transform_3(%arg0: i32, %arg1: i32, %arg2: memref<1xi32, #tpu.memory_space<smem>>) -> (i32, i32) {
    %c0_i32 = arith.constant 0 : i32
    %c0_i32_0 = arith.constant 0 : i32
    return %arg1, %c0_i32 : i32, i32
  }
}

</mosaic_0001>

<llo_original>
// kernel: tpu_custom_call.1
$region0: #{tpu_custom_call.1}
  #allocation0 [shape = 'u32[]', space=smem, size = 0x4, offset = 0x4, fixed_abs, tag = 'smem constant byte address 0x4 - core index']
  #allocation1 [shape = 'u32[72,128]{1,0:T(1,128)}', space=vmem, size = 0x9000, scoped, tag = 'internal scratch']
  #allocation2 [shape = 'f32[1,128]{1,0:T(1,128)}', space=vmem, size = 0x200, scoped, tag = 'scratch operand']
  #allocation3 [shape = 'f32[1,128]{1,0:T(1,128)}', space=vmem, size = 0x200, scoped, tag = 'scratch operand']
  #allocation4 [shape = 's32[1]{0}', space=sflag, size = 0x4, scoped, tag = 'scoped memory for tpu_custom_call.1']
  #allocation5 [shape = 's32[1]{0:T(128)S(6)}', space=smem, size = 0x200, scoped, tag = 'prefetched SMEM operand 0']
  %s0 = inlined_call_operand.<no memory space> [shape: s32[1], index: 0, kind: input, shape index: {}]
  %s1 = inlined_call_operand.hbm [shape: bf16[512,128], index: 1, kind: input, shape index: {}]
  %s2 = inlined_call_operand.hbm [shape: bf16[128,128], index: 2, kind: input, shape index: {}]
  %s3 = inlined_call_operand.vmem [shape: f32[2,128], index: 3, kind: input, shape index: {}]
  %s4 = inlined_call_operand.hbm [shape: f32[512,128], index: 4, kind: output, shape index: {}]
  %s5 = sld [smem:[#allocation0]]
  $region65: #{tpu_custom_call.1} parent=0
    _
  %s7 = ssub.s32 1, %s5
  %s8 = scalar_select 0, %s7, %s5
  %9 = sst [smem:[#allocation5]] %s0
  $region1: #{tpu_custom_call.1} parent=0
    #allocation6 [shape = 'u8[65536]{0}', space=vmem, size = 0x10000, scoped, tag = 'input window, operand 1']
    #allocation7 [shape = 's32[2]{0}', space=sflag, size = 0x8, scoped, tag = 'scoped memory for tpu_custom_call.1']
    #allocation8 [shape = 's32[2]{0}', space=sflag, size = 0x8, scoped, tag = 'scoped memory for tpu_custom_call.1']
    #allocation9 [shape = 'u8[32768]{0}', space=vmem, size = 0x8000, scoped, tag = 'input window, operand 2, single buffered']
    #allocation10 [shape = 's32[1]{0}', space=sflag, size = 0x4, scoped, tag = 'scoped memory for tpu_custom_call.1']
    #allocation11 [shape = 'u8[131072]{0}', space=vmem, size = 0x20000, scoped, tag = 'output window, operand 0']
    %10 = vsyncpa [#allocation7], 0
    %s11 = scalar_lea.sflag [#allocation7], 1
    %12 = vsyncpa %s11, 0
    %13 = vsyncpa [#allocation10], 0
    %14 = vsyncpa [#allocation8], 0
    %s15 = scalar_lea.sflag [#allocation8], 1
    %16 = vsyncpa %s15, 0
    loop: start=0, step=1, limit=10
    $region2: #{tpu_custom_call.1} parent=1 // loop_pre_header
      _
    $region3: #{tpu_custom_call.1} parent=1 // loop_header
      %s18 = sphi 0, %s22
      %p19 = scmp.ge.s32.totalorder %s18, 10
      %s25 = sphi 0, %s37
      %s26 = sphi 0, %s33
      %s27 = sphi 0, %s25
      %s28 = sphi 0, %s26
      %s29 = sphi 0, %s27
      %s30 = sphi 0, %s28
      %s40 = sphi 0, %s42
      %s43 = sphi 0, %s40
      %s44 = sphi 0, %s43
      %s60 = sphi 0, %s44
      %s64 = sphi 0, %s64
      %s66 = sphi 0, %s64
      %s67 = sphi 0, %s66
      %s81 = sphi 0, %s67
      %s85 = sphi 0, %s85
      %s87 = sphi 0, %s85
      %s88 = sphi 0, %s87
      %s102 = sphi 0, %s88
      %s108 = sphi 0, %s110
      %s111 = sphi 0, %s108
      %s112 = sphi 0, %s111
      %s128 = sphi 0, %s112
    $region4: #{tpu_custom_call.1} parent=1 // loop_header_branch
      %21 = sbr.rel (%p19) target = $region8
    $region5: #{tpu_custom_call.1} parent=1 // loop_body
      %s23 = ssub.s32 %s18, 1
      %s24 = ssub.s32 %s18, 2
      %s31 = sadd.s32 1, %s26
      %p32 = scmp.ge.s32.totalorder %s31, 4
      %s33 = scalar_select %p32, 0, %s31
      %s34 = sadd.s32 1, %s25
      %s35 = scalar_select %p32, %s34, %s25
      %p36 = scmp.ge.s32.totalorder %s35, 2
      %s37 = scalar_select %p36, 0, %s35
      %s38 = ssub.s32 %s26, %s33
      %p39 = scmp.eq.s32.totalorder %s38, 0
      %s41 = sadd.s32 %s40, 1
      %s42 = scalar_select %p39, %s40, %s41
      %p45 = pneg %p39
      %p46 = scmp.eq.s32.totalorder %s18, 7
      %p47 = por %p45, %p46
      %p48 = scmp.ne.s32.totalorder %s40, %s43
      %p49 = scmp.eq.s32.totalorder %s18, 0
      %p50 = por %p48, %p49
      %p51 = scmp.ne.s32.totalorder %s40, %s43
      %p52 = scmp.eq.s32.totalorder %s23, 7
      %p53 = por %p51, %p52
      %p54 = scmp.ne.s32.totalorder %s43, %s44
      %p55 = scmp.eq.s32.totalorder %s23, 0
      %p56 = por %p54, %p55
      %p57 = scmp.ne.s32.totalorder %s43, %s44
      %p58 = scmp.eq.s32.totalorder %s24, 7
      %p59 = por %p57, %p58
      %p61 = scmp.ne.s32.totalorder %s44, %s60
      %p62 = scmp.eq.s32.totalorder %s24, 0
      %p63 = por %p61, %p62
      %s65 = sadd.s32 %s64, 1
      %p68 = scmp.eq.s32.totalorder %s18, 7
      %p69 = scmp.ne.s32.totalorder %s64, %s66
      %p70 = scmp.eq.s32.totalorder %s18, 0
      %p71 = por %p69, %p70
      %p72 = scmp.ne.s32.totalorder %s64, %s66
      %p73 = scmp.eq.s32.totalorder %s23, 7
      %p74 = por %p72, %p73
      %p75 = scmp.ne.s32.totalorder %s66, %s67
      %p76 = scmp.eq.s32.totalorder %s23, 0
      %p77 = por %p75, %p76
      %p78 = scmp.ne.s32.totalorder %s66, %s67
      %p79 = scmp.eq.s32.totalorder %s24, 7
      %p80 = por %p78, %p79
      %p82 = scmp.ne.s32.totalorder %s67, %s81
      %p83 = scmp.eq.s32.totalorder %s24, 0
      %p84 = por %p82, %p83
      %s86 = sadd.s32 %s85, 1
      %p89 = scmp.eq.s32.totalorder %s18, 7
      %p90 = scmp.ne.s32.totalorder %s85, %s87
      %p91 = scmp.eq.s32.totalorder %s18, 0
      %p92 = por %p90, %p91
      %p93 = scmp.ne.s32.totalorder %s85, %s87
      %p94 = scmp.eq.s32.totalorder %s23, 7
      %p95 = por %p93, %p94
      %p96 = scmp.ne.s32.totalorder %s87, %s88
      %p97 = scmp.eq.s32.totalorder %s23, 0
      %p98 = por %p96, %p97
      %p99 = scmp.ne.s32.totalorder %s87, %s88
      %p100 = scmp.eq.s32.totalorder %s24, 7
      %p101 = por %p99, %p100
      %p103 = scmp.ne.s32.totalorder %s88, %s102
      %p104 = scmp.eq.s32.totalorder %s24, 0
      %p105 = por %p103, %p104
      %s106 = ssub.s32 %s26, %s33
      %p107 = scmp.eq.s32.totalorder %s106, 0
      %s109 = sadd.s32 %s108, 1
      %s110 = scalar_select %p107, %s108, %s109
      %p113 = pneg %p107
      %p114 = scmp.eq.s32.totalorder %s18, 7
      %p115 = por %p113, %p114
      %p116 = scmp.ne.s32.totalorder %s108, %s111
      %p117 = scmp.eq.s32.totalorder %s18, 0
      %p118 = por %p116, %p117
      %p119 = scmp.ne.s32.totalorder %s108, %s111
      %p120 = scmp.eq.s32.totalorder %s23, 7
      %p121 = por %p119, %p120
      %p122 = scmp.ne.s32.totalorder %s111, %s112
      %p123 = scmp.eq.s32.totalorder %s23, 0
      %p124 = por %p122, %p123
      %p125 = scmp.ne.s32.totalorder %s111, %s112
      %p126 = scmp.eq.s32.totalorder %s24, 7
      %p127 = por %p125, %p126
      %p129 = scmp.ne.s32.totalorder %s112, %s128
      %p130 = scmp.eq.s32.totalorder %s24, 0
      %p131 = por %p129, %p130
      %p132 = scmp.le.s32.totalorder 1, %s18
      %p133 = scmp.lt.s32.totalorder %s18, 9
      %p134 = pnand %p132, %p133
      %p135 = pneg %p134
      // Predicated region
      $region9: #{tpu_custom_call.1} parent=5 // pred_check
        _
      $region10: #{tpu_custom_call.1} parent=5 // pred_check_branch
        %137 = sbr.rel (%p134) target = $region12
      $region11: #{tpu_custom_call.1} parent=5 // pred_region
        %s138 = ssub.s32 %s18, 1
        // Predicated region
        $region13: #{tpu_custom_call.1} parent=11 // pred_check
          %p139 = pneg %p77
        $region14: #{tpu_custom_call.1} parent=11 // pred_check_branch
          %141 = sbr.rel (%p139) target = $region16
        $region15: #{tpu_custom_call.1} parent=11 // pred_region
          %143 = vsyncadd [#allocation10], 0
          %s144 = sshll.u32 %s2, 4
          %s145 = int_to_ptr.hbm [resolvable:$true] %s144
          %s146 = sshll.u32 [#allocation9], 4
          %s147 = int_to_ptr.vmem [resolvable:$true] %s146
          %152 = dma.hbm_to_vmem [thread:$0]  %s145, 1024, %s147, [#allocation10], 64, 64, 4
        $region16: #{tpu_custom_call.1} parent=11 // pred_fallthru
          _
        // Predicated region
        $region17: #{tpu_custom_call.1} parent=11 // pred_check
          %p153 = pneg %p98
        $region18: #{tpu_custom_call.1} parent=11 // pred_check_branch
          %155 = sbr.rel (%p153) target = $region20
        $region19: #{tpu_custom_call.1} parent=11 // pred_region
          _
        $region20: #{tpu_custom_call.1} parent=11 // pred_fallthru
          _
      $region12: #{tpu_custom_call.1} parent=5 // pred_fallthru
        _
      %p156 = scmp.lt.s32.totalorder %s18, 8
      // Predicated region
      $region21: #{tpu_custom_call.1} parent=5 // pred_check
        %p157 = pneg %p156
      $region22: #{tpu_custom_call.1} parent=5 // pred_check_branch
        %159 = sbr.rel (%p157) target = $region24
      $region23: #{tpu_custom_call.1} parent=5 // pred_region
        // Predicated region
        $region25: #{tpu_custom_call.1} parent=23 // pred_check
          %p160 = pneg %p50
        $region26: #{tpu_custom_call.1} parent=23 // pred_check_branch
          %162 = sbr.rel (%p160) target = $region28
        $region27: #{tpu_custom_call.1} parent=23 // pred_region
          %s163 = sand.u32 %s40, 1
          %s164 = scalar_lea.sflag [#allocation7], %s163
          %s165 = sand.u32 %s40, 1
          %s166 = smul.addr %s165, 64
          %s167 = scalar_lea.vmem [#allocation6], %s166
          %s168 = smul.u32 16, %s26
          %170 = vsyncadd %s164, 0
          %s171 = smul.addr %s168, 4
          %s172 = scalar_lea.hbm %s1, %s171
          %s173 = sshll.u32 %s172, 4
          %s174 = int_to_ptr.hbm [resolvable:$true] %s173
          %s175 = sshll.u32 %s167, 4
          %s176 = int_to_ptr.vmem [resolvable:$true] %s175
          %181 = dma.hbm_to_vmem [thread:$0]  %s174, 1024, %s176, %s164, 64, 64, 4
        $region28: #{tpu_custom_call.1} parent=23 // pred_fallthru
          _
      $region24: #{tpu_custom_call.1} parent=5 // pred_fallthru
        _
      %p182 = scmp.le.s32.totalorder 1, %s18
      %p183 = scmp.lt.s32.totalorder %s18, 9
      %p184 = pnand %p182, %p183
      %p185 = pneg %p184
      // Predicated region
      $region29: #{tpu_custom_call.1} parent=5 // pred_check
        _
      $region30: #{tpu_custom_call.1} parent=5 // pred_check_branch
        %187 = sbr.rel (%p184) target = $region32
      $region31: #{tpu_custom_call.1} parent=5 // pred_region
        %s188 = ssub.s32 %s18, 1
        %s189 = sand.u32 %s43, 1
        %s190 = scalar_lea.sflag [#allocation7], %s189
        %s191 = sand.u32 %s43, 1
        %s192 = smul.addr %s191, 64
        %s193 = scalar_lea.vmem [#allocation6], %s192
        // Predicated region
        $region33: #{tpu_custom_call.1} parent=31 // pred_check
          %p194 = pneg %p56
        $region34: #{tpu_custom_call.1} parent=31 // pred_check_branch
          %196 = sbr.rel (%p194) target = $region36
        $region35: #{tpu_custom_call.1} parent=31 // pred_region
          %198 = dma.done %s190, 1024
        $region36: #{tpu_custom_call.1} parent=31 // pred_fallthru
          _
        // Predicated region
        $region37: #{tpu_custom_call.1} parent=31 // pred_check
          %p199 = pneg %p77
        $region38: #{tpu_custom_call.1} parent=31 // pred_check_branch
          %201 = sbr.rel (%p199) target = $region40
        $region39: #{tpu_custom_call.1} parent=31 // pred_region
          %203 = dma.done [#allocation10], 1024
        $region40: #{tpu_custom_call.1} parent=31 // pred_fallthru
          _
        %s204 = sand.u32 %s43, 1
        %s205 = scalar_lea.sflag [#allocation7], %s204
        %s206 = sand.u32 %s43, 1
        %s207 = smul.addr %s206, 64
        %s208 = scalar_lea.vmem [#allocation6], %s207
        %p209 = pneg %p56
        %p210 = pneg %p53
        %p211 = pneg %p77
        %p212 = pneg %p74
        %p213 = pneg %p98
        %p214 = pneg %p95
        %p215 = pneg %p124
        %p216 = pneg %p121
        %s217 = sand.u32 %s111, 1
        %s218 = scalar_lea.sflag [#allocation8], %s217
        %s219 = sand.u32 %s111, 1
        %s220 = smul.addr %s219, 128
        %s221 = scalar_lea.vmem [#allocation11], %s220
        %s222 = smul.u32 16, %s28
        %s223 = smul.u32 16, %s28
        %p224 = scmp.eq.s32.totalorder %s27, 0
        %p225 = scmp.eq.s32.totalorder %s28, 0
        %p226 = pnand %p224, %p225
        %p227 = pneg %p226
        // Predicated region
        $region41: #{tpu_custom_call.1} parent=31 // pred_check
          _
        $region42: #{tpu_custom_call.1} parent=31 // pred_check_branch
          %229 = sbr.rel (%p226) target = $region44
        $region43: #{tpu_custom_call.1} parent=31 // pred_region
          %230 = vst [vmem:[#allocation2] sm:$0x1] 0.0
          %231 = vst [vmem:[#allocation3] sm:$0x1] 0.0
        $region44: #{tpu_custom_call.1} parent=31 // pred_fallthru
          _
        %v232 = vld [vmem:[%s193] sm:$0xf]
        %v233 = vld [vmem:[%s193 + $0x4] sm:$0xf]
        %v234 = vld [vmem:[%s193 + $0x8] sm:$0xf]
        %v235 = vld [vmem:[%s193 + $0xc] sm:$0xf]
        %v236 = vld [vmem:[%s193 + $0x10] sm:$0xf]
        %v237 = vld [vmem:[%s193 + $0x14] sm:$0xf]
        %v238 = vld [vmem:[%s193 + $0x18] sm:$0xf]
        %v239 = vld [vmem:[%s193 + $0x1c] sm:$0xf]
        %v240 = vld [vmem:[%s193 + $0x20] sm:$0xf]
        %v241 = vld [vmem:[%s193 + $0x24] sm:$0xf]
        %v242 = vld [vmem:[%s193 + $0x28] sm:$0xf]
        %v243 = vld [vmem:[%s193 + $0x2c] sm:$0xf]
        %v244 = vld [vmem:[%s193 + $0x30] sm:$0xf]
        %v245 = vld [vmem:[%s193 + $0x34] sm:$0xf]
        %v246 = vld [vmem:[%s193 + $0x38] sm:$0xf]
        %v247 = vld [vmem:[%s193 + $0x3c] sm:$0xf]
        %v248 = vld [vmem:[#allocation9] sm:$0xf]
        %v249 = vld [vmem:[#allocation9 + $0x4] sm:$0xf]
        %v250 = vld [vmem:[#allocation9 + $0x8] sm:$0xf]
        %v251 = vld [vmem:[#allocation9 + $0xc] sm:$0xf]
        %v252 = vld [vmem:[#allocation9 + $0x10] sm:$0xf]
        %v253 = vld [vmem:[#allocation9 + $0x14] sm:$0xf]
        %v254 = vld [vmem:[#allocation9 + $0x18] sm:$0xf]
        %v255 = vld [vmem:[#allocation9 + $0x1c] sm:$0xf]
        %v256 = vld [vmem:[#allocation9 + $0x20] sm:$0xf]
        %v257 = vld [vmem:[#allocation9 + $0x24] sm:$0xf]
        %v258 = vld [vmem:[#allocation9 + $0x28] sm:$0xf]
        %v259 = vld [vmem:[#allocation9 + $0x2c] sm:$0xf]
        %v260 = vld [vmem:[#allocation9 + $0x30] sm:$0xf]
        %v261 = vld [vmem:[#allocation9 + $0x34] sm:$0xf]
        %v262 = vld [vmem:[#allocation9 + $0x38] sm:$0xf]
        %v263 = vld [vmem:[#allocation9 + $0x3c] sm:$0xf]
        %v280 = vunpack.c.l.b16 %v232
        %v281 = vunpack.c.l.b16 %v233
        %v282 = vunpack.c.l.b16 %v234
        %v283 = vunpack.c.l.b16 %v235
        %v284 = vunpack.c.l.b16 %v236
        %v285 = vunpack.c.l.b16 %v237
        %v286 = vunpack.c.l.b16 %v238
        %v287 = vunpack.c.l.b16 %v239
        %v288 = vunpack.c.l.b16 %v240
        %v289 = vunpack.c.l.b16 %v241
        %v290 = vunpack.c.l.b16 %v242
        %v291 = vunpack.c.l.b16 %v243
        %v292 = vunpack.c.l.b16 %v244
        %v293 = vunpack.c.l.b16 %v245
        %v294 = vunpack.c.l.b16 %v246
        %v295 = vunpack.c.l.b16 %v247
        %v296 = vpack.c.b16 %v281, %v280
        %v297 = vpack.c.b16 %v283, %v282
        %v298 = vpack.c.b16 %v285, %v284
        %v299 = vpack.c.b16 %v287, %v286
        %v300 = vpack.c.b16 %v289, %v288
        %v301 = vpack.c.b16 %v291, %v290
        %v302 = vpack.c.b16 %v293, %v292
        %v303 = vpack.c.b16 %v295, %v294
        %v328 = vunpack.c.l.b16 %v248
        %v329 = vunpack.c.l.b16 %v249
        %v330 = vunpack.c.l.b16 %v250
        %v331 = vunpack.c.l.b16 %v251
        %v332 = vunpack.c.l.b16 %v252
        %v333 = vunpack.c.l.b16 %v253
        %v334 = vunpack.c.l.b16 %v254
        %v335 = vunpack.c.l.b16 %v255
        %v336 = vunpack.c.l.b16 %v256
        %v337 = vunpack.c.l.b16 %v257
        %v338 = vunpack.c.l.b16 %v258
        %v339 = vunpack.c.l.b16 %v259
        %v340 = vunpack.c.l.b16 %v260
        %v341 = vunpack.c.l.b16 %v261
        %v342 = vunpack.c.l.b16 %v262
        %v343 = vunpack.c.l.b16 %v263
        %v344 = vpack.c.b16 %v329, %v328
        %v345 = vpack.c.b16 %v331, %v330
        %v346 = vpack.c.b16 %v333, %v332
        %v347 = vpack.c.b16 %v335, %v334
        %v348 = vpack.c.b16 %v337, %v336
        %v349 = vpack.c.b16 %v339, %v338
        %v350 = vpack.c.b16 %v341, %v340
        %v351 = vpack.c.b16 %v343, %v342
        %360 = vmatpush.bf16.msra.mxu0 %v351
        %361 = vmatpush.bf16.msra.mxu0 %v350
        %362 = vmatpush.bf16.msra.mxu0 %v349
        %363 = vmatpush.bf16.msra.mxu0 %v348
        %364 = vmatpush.bf16.msra.mxu0 %v347
        %365 = vmatpush.bf16.msra.mxu0 %v346
        %366 = vmatpush.bf16.msra.mxu0 %v345
        %367 = vmatpush.bf16.msra.mxu0 %v344
        %368 = vmatmul.bf16.gmra.mxu0 %v296
        %v369 = vpop.f32.mrf.mxu0
        %v370 = vadd.f32 0.0, %v369
        %v371 = vpop.f32.mrf.mxu0
        %v372 = vadd.f32 0.0, %v371
        %373 = vmatmul.bf16.gmra.mxu0 %v297
        %v374 = vpop.f32.mrf.mxu0
        %v375 = vadd.f32 0.0, %v374
        %v376 = vpop.f32.mrf.mxu0
        %v377 = vadd.f32 0.0, %v376
        %378 = vmatmul.bf16.gmra.mxu0 %v298
        %v379 = vpop.f32.mrf.mxu0
        %v380 = vadd.f32 0.0, %v379
        %v381 = vpop.f32.mrf.mxu0
        %v382 = vadd.f32 0.0, %v381
        %383 = vmatmul.bf16.gmra.mxu0 %v299
        %v384 = vpop.f32.mrf.mxu0
        %v385 = vadd.f32 0.0, %v384
        %v386 = vpop.f32.mrf.mxu0
        %v387 = vadd.f32 0.0, %v386
        %388 = vmatmul.bf16.gmra.mxu0 %v300
        %v389 = vpop.f32.mrf.mxu0
        %v390 = vadd.f32 0.0, %v389
        %v391 = vpop.f32.mrf.mxu0
        %v392 = vadd.f32 0.0, %v391
        %393 = vmatmul.bf16.gmra.mxu0 %v301
        %v394 = vpop.f32.mrf.mxu0
        %v395 = vadd.f32 0.0, %v394
        %v396 = vpop.f32.mrf.mxu0
        %v397 = vadd.f32 0.0, %v396
        %398 = vmatmul.bf16.gmra.mxu0 %v302
        %v399 = vpop.f32.mrf.mxu0
        %v400 = vadd.f32 0.0, %v399
        %v401 = vpop.f32.mrf.mxu0
        %v402 = vadd.f32 0.0, %v401
        %403 = vmatmul.bf16.gmra.mxu0 %v303
        %v404 = vpop.f32.mrf.mxu0
        %v405 = vadd.f32 0.0, %v404
        %v406 = vpop.f32.mrf.mxu0
        %v407 = vadd.f32 0.0, %v406
        %408 = vdwg.mxu0
        // Predicated region
        $region45: #{tpu_custom_call.1} parent=31 // pred_check
          %p409 = pneg %p224
        $region46: #{tpu_custom_call.1} parent=31 // pred_check_branch
          %411 = sbr.rel (%p409) target = $region48
        $region47: #{tpu_custom_call.1} parent=31 // pred_region
          %v412 = vld [vmem:[#allocation2] sm:$0x1]
          %v413 = vadd.f32 %v370, %v372
          %v414 = vadd.f32 %v413, %v375
          %v415 = vadd.f32 %v414, %v377
          %v416 = vadd.f32 %v415, %v380
          %v417 = vadd.f32 %v416, %v382
          %v418 = vadd.f32 %v417, %v385
          %v419 = vadd.f32 %v418, %v387
          %v420 = vadd.f32 %v419, %v390
          %v421 = vadd.f32 %v420, %v392
          %v422 = vadd.f32 %v421, %v395
          %v423 = vadd.f32 %v422, %v397
          %v424 = vadd.f32 %v423, %v400
          %v425 = vadd.f32 %v424, %v402
          %v426 = vadd.f32 %v425, %v405
          %v427 = vadd.f32 %v426, %v407
          %v428 = vrot.slane %v427, 4
          %v429 = vadd.f32 %v427, %v428
          %v430 = vrot.slane %v429, 2
          %v431 = vadd.f32 %v429, %v430
          %v432 = vrot.slane %v431, 1
          %v433 = vadd.f32 %v431, %v432
          %v434 = vadd.f32 %v412, %v433
          %435 = vst [vmem:[#allocation2] sm:$0x1] %v434
          %v436 = vld [vmem:[#allocation3] sm:$0x1]
          %v437 = vmul.f32 %v370, %v370
          %v438 = vmul.f32 %v372, %v372
          %v439 = vmul.f32 %v375, %v375
          %v440 = vmul.f32 %v377, %v377
          %v441 = vmul.f32 %v380, %v380
          %v442 = vmul.f32 %v382, %v382
          %v443 = vmul.f32 %v385, %v385
          %v444 = vmul.f32 %v387, %v387
          %v445 = vmul.f32 %v390, %v390
          %v446 = vmul.f32 %v392, %v392
          %v447 = vmul.f32 %v395, %v395
          %v448 = vmul.f32 %v397, %v397
          %v449 = vmul.f32 %v400, %v400
          %v450 = vmul.f32 %v402, %v402
          %v451 = vmul.f32 %v405, %v405
          %v452 = vmul.f32 %v407, %v407
          %v453 = vadd.f32 %v437, %v438
          %v454 = vadd.f32 %v453, %v439
          %v455 = vadd.f32 %v454, %v440
          %v456 = vadd.f32 %v455, %v441
          %v457 = vadd.f32 %v456, %v442
          %v458 = vadd.f32 %v457, %v443
          %v459 = vadd.f32 %v458, %v444
          %v460 = vadd.f32 %v459, %v445
          %v461 = vadd.f32 %v460, %v446
          %v462 = vadd.f32 %v461, %v447
          %v463 = vadd.f32 %v462, %v448
          %v464 = vadd.f32 %v463, %v449
          %v465 = vadd.f32 %v464, %v450
          %v466 = vadd.f32 %v465, %v451
          %v467 = vadd.f32 %v466, %v452
          %v468 = vrot.slane %v467, 4
          %v469 = vadd.f32 %v467, %v468
          %v470 = vrot.slane %v469, 2
          %v471 = vadd.f32 %v469, %v470
          %v472 = vrot.slane %v471, 1
          %v473 = vadd.f32 %v471, %v472
          %v474 = vadd.f32 %v436, %v473
          %475 = vst [vmem:[#allocation3] sm:$0x1] %v474
        $region48: #{tpu_custom_call.1} parent=31 // pred_fallthru
          _
        %p476 = scmp.eq.s32.totalorder %s27, 1
        // Predicated region
        $region49: #{tpu_custom_call.1} parent=31 // pred_check
          %p477 = pneg %p476
        $region50: #{tpu_custom_call.1} parent=31 // pred_check_branch
          %479 = sbr.rel (%p477) target = $region52
        $region51: #{tpu_custom_call.1} parent=31 // pred_region
          %s480 = sld [smem:[#allocation5]]
          %p481 = scmp.gt.s32.totalorder %s480, 1
          %s482 = scalar_select %p481, %s480, 1
          %s483 = scvt.s32.f32 %s482
          %v484 = vld [vmem:[#allocation2] sm:$0x1]
          %v485 = vstv %s483
          %v486 = vrcp.pop %v485
          %v487 = vmul.f32 %v485, %v486
          %v488 = vsub.f32 1.0, %v487
          %v489 = vmul.f32 %v486, %v488
          %v490 = vadd.f32 %v486, %v489
          %vm491 = vweird.f32 %v485
          %vm492 = vweird.f32 %v486
          %vm493 = vmor %vm491, %vm492
          %v494 = vsel %vm493, %v486, %v490
          %v495 = vand.u32 2147483647, %v485
          %vm496 = vcmp.eq.f32.partialorder %v495, 8.507059e+37
          %v497 = vand.u32 %v485, 2147483648
          %v498 = vor.u32 1.1754944e-38, %v497
          %v499 = vsel %vm496, %v498, %v494
          %v500 = vmul.f32 %v484, %v499
          %v501 = vld [vmem:[#allocation3] sm:$0x1]
          %v502 = vmul.f32 %v501, %v499
          %v503 = vmul.f32 %v500, %v500
          %v504 = vsub.f32 %v502, %v503
          %v505 = vadd.f32 %v504, 1e-05
          %v506 = vrsqrt.pop %v505
          %v507 = vmul.f32 %v506, %v505
          %v508 = vmul.f32 %v507, %v506
          %v509 = vmul.f32 0.5, %v508
          %v510 = vsub.f32 1.5, %v509
          %v511 = vmul.f32 %v506, %v510
          %vm512 = vweird.f32 %v505
          %vm513 = vweird.f32 %v506
          %vm514 = vmor %vm512, %vm513
          %v515 = vsel %vm514, %v506, %v511
          %v516 = vld [vmem:[%s3] sm:$0x1]
          %v517 = vmul.f32 %v516, %v515
          %v518 = vld [vmem:[%s3 + $0x1] sm:$0x1]
          %v519 = vmul.f32 %v500, %v517
          %v520 = vsub.f32 %v518, %v519
          %v521 = vperm.slane %v517, 0
          %v522 = vmul.f32 %v370, %v521
          %v523 = vmul.f32 %v372, %v521
          %v524 = vmul.f32 %v375, %v521
          %v525 = vmul.f32 %v377, %v521
          %v526 = vmul.f32 %v380, %v521
          %v527 = vmul.f32 %v382, %v521
          %v528 = vmul.f32 %v385, %v521
          %v529 = vmul.f32 %v387, %v521
          %v530 = vmul.f32 %v390, %v521
          %v531 = vmul.f32 %v392, %v521
          %v532 = vmul.f32 %v395, %v521
          %v533 = vmul.f32 %v397, %v521
          %v534 = vmul.f32 %v400, %v521
          %v535 = vmul.f32 %v402, %v521
          %v536 = vmul.f32 %v405, %v521
          %v537 = vmul.f32 %v407, %v521
          %v538 = vperm.slane %v520, 0
          %v539 = vadd.f32 %v522, %v538
          %v540 = vadd.f32 %v523, %v538
          %v541 = vadd.f32 %v524, %v538
          %v542 = vadd.f32 %v525, %v538
          %v543 = vadd.f32 %v526, %v538
          %v544 = vadd.f32 %v527, %v538
          %v545 = vadd.f32 %v528, %v538
          %v546 = vadd.f32 %v529, %v538
          %v547 = vadd.f32 %v530, %v538
          %v548 = vadd.f32 %v531, %v538
          %v549 = vadd.f32 %v532, %v538
          %v550 = vadd.f32 %v533, %v538
          %v551 = vadd.f32 %v534, %v538
          %v552 = vadd.f32 %v535, %v538
          %v553 = vadd.f32 %v536, %v538
          %v554 = vadd.f32 %v537, %v538
          %v555 = vmax.f32 %v539, 0.0
          %v556 = vmax.f32 %v540, 0.0
          %v557 = vmax.f32 %v541, 0.0
          %v558 = vmax.f32 %v542, 0.0
          %v559 = vmax.f32 %v543, 0.0
          %v560 = vmax.f32 %v544, 0.0
          %v561 = vmax.f32 %v545, 0.0
          %v562 = vmax.f32 %v546, 0.0
          %v563 = vmax.f32 %v547, 0.0
          %v564 = vmax.f32 %v548, 0.0
          %v565 = vmax.f32 %v549, 0.0
          %v566 = vmax.f32 %v550, 0.0
          %v567 = vmax.f32 %v551, 0.0
          %v568 = vmax.f32 %v552, 0.0
          %v569 = vmax.f32 %v553, 0.0
          %v570 = vmax.f32 %v554, 0.0
          %571 = vst [vmem:[%s221] sm:$0xff] %v555
          %572 = vst [vmem:[%s221 + $0x8] sm:$0xff] %v556
          %573 = vst [vmem:[%s221 + $0x10] sm:$0xff] %v557
          %574 = vst [vmem:[%s221 + $0x18] sm:$0xff] %v558
          %575 = vst [vmem:[%s221 + $0x20] sm:$0xff] %v559
          %576 = vst [vmem:[%s221 + $0x28] sm:$0xff] %v560
          %577 = vst [vmem:[%s221 + $0x30] sm:$0xff] %v561
          %578 = vst [vmem:[%s221 + $0x38] sm:$0xff] %v562
          %579 = vst [vmem:[%s221 + $0x40] sm:$0xff] %v563
          %580 = vst [vmem:[%s221 + $0x48] sm:$0xff] %v564
          %581 = vst [vmem:[%s221 + $0x50] sm:$0xff] %v565
          %582 = vst [vmem:[%s221 + $0x58] sm:$0xff] %v566
          %583 = vst [vmem:[%s221 + $0x60] sm:$0xff] %v567
          %584 = vst [vmem:[%s221 + $0x68] sm:$0xff] %v568
          %585 = vst [vmem:[%s221 + $0x70] sm:$0xff] %v569
          %586 = vst [vmem:[%s221 + $0x78] sm:$0xff] %v570
        $region52: #{tpu_custom_call.1} parent=31 // pred_fallthru
          _
        %s587 = sand.u32 %s111, 1
        %s588 = scalar_lea.sflag [#allocation8], %s587
        %s589 = sand.u32 %s111, 1
        %s590 = smul.addr %s589, 128
        %s591 = scalar_lea.vmem [#allocation11], %s590
        // Predicated region
        $region53: #{tpu_custom_call.1} parent=31 // pred_check
          %p592 = pneg %p121
        $region54: #{tpu_custom_call.1} parent=31 // pred_check_branch
          %594 = sbr.rel (%p592) target = $region56
        $region55: #{tpu_custom_call.1} parent=31 // pred_region
          %s595 = smul.u32 16, %s28
          %597 = vsyncadd %s588, 0
          %s598 = smul.addr %s595, 8
          %s599 = scalar_lea.hbm %s4, %s598
          %s600 = sshll.u32 %s591, 4
          %s601 = int_to_ptr.vmem [resolvable:$true] %s600
          %s602 = sshll.u32 %s599, 4
          %s603 = int_to_ptr.hbm [resolvable:$true] %s602
          %608 = dma.vmem_to_hbm [thread:$0]  %s601, 2048, %s603, %s588, 128, 128, 8
        $region56: #{tpu_custom_call.1} parent=31 // pred_fallthru
          _
      $region32: #{tpu_custom_call.1} parent=5 // pred_fallthru
        _
      %p609 = scmp.le.s32.totalorder 2, %s18
      // Predicated region
      $region57: #{tpu_custom_call.1} parent=5 // pred_check
        %p610 = pneg %p609
      $region58: #{tpu_custom_call.1} parent=5 // pred_check_branch
        %612 = sbr.rel (%p610) target = $region60
      $region59: #{tpu_custom_call.1} parent=5 // pred_region
        %s613 = ssub.s32 %s18, 2
        // Predicated region
        $region61: #{tpu_custom_call.1} parent=59 // pred_check
          %p614 = pneg %p127
        $region62: #{tpu_custom_call.1} parent=59 // pred_check_branch
          %616 = sbr.rel (%p614) target = $region64
        $region63: #{tpu_custom_call.1} parent=59 // pred_region
          %s617 = sand.u32 %s112, 1
          %s618 = scalar_lea.sflag [#allocation8], %s617
          %s619 = sand.u32 %s112, 1
          %s620 = smul.addr %s619, 128
          %s621 = scalar_lea.vmem [#allocation11], %s620
          %623 = dma.done %s618, 2048
        $region64: #{tpu_custom_call.1} parent=59 // pred_fallthru
          _
      $region60: #{tpu_custom_call.1} parent=5 // pred_fallthru
        _
    $region6: #{tpu_custom_call.1} parent=1 // loop_footer
      %s22 = sadd.s32 1, %s18
    $region7: #{tpu_custom_call.1} parent=1 // loop_footer_branch
      %17 = sbr.rel target = $region3
    $region8: #{tpu_custom_call.1} parent=1 // loop_exit
      _
    %624 = vsyncpa [#allocation7], 1
    %s625 = scalar_lea.sflag [#allocation7], 1
    %626 = vsyncpa %s625, 1
    %627 = vsyncpa [#allocation10], 1
    %628 = vsyncpa [#allocation8], 1
    %s629 = scalar_lea.sflag [#allocation8], 1
    %630 = vsyncpa %s629, 1

</llo_original>
